<compile_context>
chip_gen: v6e
topology: v6e:2x2x1
jax: 0.10.0
libtpu: 0.0.40
codegen_flags: <defaults>
</compile_context>

<pallas_src>
import functools

import jax
import jax.numpy as jnp
from jax.experimental import pallas as pl
from jax.experimental.pallas import tpu as pltpu

LANES = 128
_TARGET_BLOCK_BYTES = 2 * 1024 * 1024  # ~2 MiB per block


def _max_tile_rows(dtype) -> int:
    """Rows per block so that one block is ~2 MiB, rounded to a multiple of 512
    (keeps the sublane dim divisible by 8/16/32 for any packed dtype)."""
    itemsize = jnp.dtype(dtype).itemsize
    rows = _TARGET_BLOCK_BYTES // (LANES * itemsize)
    return max(512, (rows // 512) * 512)


def _pow_impl(x, p):
    """Elementwise x ** p, specialized for cheap exponents.

    jnp.power with a non-integer exponent lowers to exp(p*log(x)) — two EUP
    transcendentals per element. For small integer / half-integer exponents we
    use VPU multiplies (+ at most one sqrt) so compute stays fully hidden
    behind the HBM stream. Semantics match torch: negative bases with a
    fractional p still produce NaN (sqrt(neg) = NaN propagates through the
    products).
    """
    if isinstance(p, (int, float)) and not isinstance(p, bool):
        pf = float(p)
        # Small integer exponents -> repeated multiplies.
        if pf == float(int(pf)) and abs(int(pf)) <= 4:
            ip = int(pf)
            if ip == 0:
                return jnp.ones_like(x)
            y = x
            for _ in range(abs(ip) - 1):
                y = y * x
            return y if ip > 0 else 1.0 / y
        # Positive half-integer exponents (0.5, 1.5, 2.5, ...) -> sqrt + muls.
        if (pf - 0.5) == float(int(pf - 0.5)) and 0.0 < pf <= 4.5:
            ip = int(pf - 0.5)
            y = jnp.sqrt(x)
            for _ in range(ip):
                y = y * x
            return y
    return jnp.power(x, p)


def _pow_kernel(x_ref, o_ref, *, p):
    o_ref[...] = _pow_impl(x_ref[...], p).astype(o_ref.dtype)


def pallas_pow(x: jax.Array, p) -> jax.Array:
    """Compute x ** p elementwise with a Pallas TPU kernel.

    Matches torch semantics of `x ** p` for a python-scalar exponent on
    floating inputs: same shape and dtype as x.
    """
    orig_shape = x.shape
    orig_dtype = x.dtype

    flat = x.reshape(-1)
    n = flat.shape[0]

    # Lane-dense 2D slab. When n is a multiple of 128 this is metadata-only.
    padded = (n % LANES) != 0
    if padded:
        # TODO(synk): fold the ragged tail into a masked final tile instead of
        # this wrapper-side pad/slice (costs one extra HBM pass) for sizes
        # that are not multiples of 128.
        n_pad = pl.cdiv(n, LANES) * LANES
        flat = jnp.pad(flat, (0, n_pad - n), constant_values=1)  # 1**p finite
    rows = flat.shape[0] // LANES
    x2d = flat.reshape(rows, LANES)

    # Large blocks + cdiv grid (ragged last row-block handled by Pallas).
    max_rows = _max_tile_rows(orig_dtype)
    if rows <= max_rows:
        tile_rows = rows          # full-extent block on the sublane dim
    else:
        tile_rows = max_rows      # multiple of 512 -> satisfies (8,128) tiling
    grid = (pl.cdiv(rows, tile_rows),)

    out2d = pl.pallas_call(
        functools.partial(_pow_kernel, p=p),
        out_shape=jax.ShapeDtypeStruct((rows, LANES), orig_dtype),
        grid_spec=pltpu.PrefetchScalarGridSpec(
            num_scalar_prefetch=0,
            grid=grid,
            in_specs=[pl.BlockSpec((tile_rows, LANES), lambda i: (i, 0))],
            out_specs=pl.BlockSpec((tile_rows, LANES), lambda i: (i, 0)),
        ),
        compiler_params=pltpu.CompilerParams(
            dimension_semantics=("parallel",),
        ),
    )(x2d)

    out = out2d.reshape(-1)
    if padded:
        out = out[:n]
    return out.reshape(orig_shape)


if __name__ == "__main__":
    key = jax.random.PRNGKey(0)
    # Small NCHW-shaped input consistent with a generic tensor forward pass.
    x = jax.random.uniform(
        key, (2, 4, 16, 16), dtype=jnp.float32, minval=0.1, maxval=2.0
    )

    p = 2.5  # the module's exponent parameter (deterministic, set in-script)

    y = pallas_pow(x, p)
    jax.block_until_ready(y)

    # Verify against plain JAX reference (== torch x ** p semantics).
    y_ref = x ** p
    assert y.shape == x.shape and y.dtype == x.dtype
    assert jnp.allclose(y, y_ref, rtol=1e-5, atol=1e-5), "mismatch vs reference"

    print("KERNEL_OK")
</pallas_src>

<mosaic_0001>
module attributes {stable_mosaic.version = 11 : i64} {
  func.func @_pow_kernel(%arg0: i32, %arg1: memref<16x128xf32, #tpu.memory_space<vmem>>, %arg2: memref<16x128xf32, #tpu.memory_space<vmem>>) attributes {dimension_semantics = [#tpu.dimension_semantics<parallel>], iteration_bounds = array<i64: 1>, scalar_prefetch = 0 : i64, scratch_operands = 0 : i64, tpu.core_type = #tpu.core_type<tc>, window_params = [{transform_indices = @transform_0, window_bounds = array<i64: 16, 128>}, {transform_indices = @transform_1, window_bounds = array<i64: 16, 128>}]} {
    %c0 = arith.constant 0 : index
    %c0_0 = arith.constant 0 : index
    %0 = vector.load %arg1[%c0, %c0_0] : memref<16x128xf32, #tpu.memory_space<vmem>>, vector<16x128xf32>
    %1 = math.sqrt %0 : vector<16x128xf32>
    %2 = arith.mulf %1, %0 : vector<16x128xf32>
    %3 = arith.mulf %2, %0 : vector<16x128xf32>
    %c0_1 = arith.constant 0 : index
    %c0_2 = arith.constant 0 : index
    %4 = vector.load %arg2[%c0_1, %c0_2] : memref<16x128xf32, #tpu.memory_space<vmem>>, vector<16x128xf32>
    tpu.vector_store %arg2[%c0_1, %c0_2], %3 {strides = array<i32>} : memref<16x128xf32, #tpu.memory_space<vmem>>, vector<16x128xf32>,
    return
  }
  func.func @transform_0(%arg0: i32) -> (i32, i32) {
    %c0_i32 = arith.constant 0 : i32
    %c0_i32_0 = arith.constant 0 : i32
    return %arg0, %c0_i32 : i32, i32
  }
  func.func @transform_1(%arg0: i32) -> (i32, i32) {
    %c0_i32 = arith.constant 0 : i32
    %c0_i32_0 = arith.constant 0 : i32
    return %arg0, %c0_i32 : i32, i32
  }
}

</mosaic_0001>

<llo_original>
// kernel: tpu_custom_call.1
$region0: #{tpu_custom_call.1}
  #allocation0 [shape = 'u32[]', space=smem, size = 0x4, offset = 0x4, fixed_abs, tag = 'smem constant byte address 0x4 - core index']
  #allocation1 [shape = 'u32[144,128]{1,0:T(1,128)}', space=vmem, size = 0x12000, scoped, tag = 'internal scratch']
  %s0 = inlined_call_operand.hbm [shape: f32[16,128], index: 0, kind: input, shape index: {}]
  %s1 = inlined_call_operand.hbm [shape: f32[16,128], index: 1, kind: output, shape index: {}]
  %s2 = sld [smem:[#allocation0]]
  $region18: #{tpu_custom_call.1} parent=0
    _
  %s4 = ssub.s32 1, %s2
  %s5 = scalar_select 0, %s4, %s2
  $region1: #{tpu_custom_call.1} parent=0
    #allocation2 [shape = 'u8[8192]{0}', space=vmem, size = 0x2000, scoped, tag = 'input window, operand 0, single buffered']
    #allocation3 [shape = 's32[1]{0}', space=sflag, size = 0x4, scoped, tag = 'scoped memory for tpu_custom_call.1']
    #allocation4 [shape = 's32[1]{0}', space=sflag, size = 0x4, scoped, tag = 'scoped memory for tpu_custom_call.1']
    #allocation5 [shape = 'u8[8192]{0}', space=vmem, size = 0x2000, scoped, tag = 'output window, operand 0, single buffered']
    %6 = vsyncpa [#allocation3], 0
    %7 = vsyncpa [#allocation4], 0
    // Predicated region
    $region2: #{tpu_custom_call.1} parent=1 // pred_check
      _
    $region3: #{tpu_custom_call.1} parent=1 // pred_check_branch
      %9 = sbr.rel (0) target = $region5
    $region4: #{tpu_custom_call.1} parent=1 // pred_region
      %s11 = ssub.s32 256, 256
      %12 = vsyncadd [#allocation3], %s11
      %s13 = sshll.u32 [#allocation2], 4
      %s14 = int_to_ptr.vmem [resolvable:$true] %s13
      %19 = dma.hbm_to_vmem [thread:$0]  %s0, 256, %s14, [#allocation3], 128, 128, 8
    $region5: #{tpu_custom_call.1} parent=1 // pred_fallthru
      _
    // Predicated region
    $region6: #{tpu_custom_call.1} parent=1 // pred_check
      _
    $region7: #{tpu_custom_call.1} parent=1 // pred_check_branch
      %21 = sbr.rel (0) target = $region9
    $region8: #{tpu_custom_call.1} parent=1 // pred_region
      %22 = dma.done [#allocation3], 256
    $region9: #{tpu_custom_call.1} parent=1 // pred_fallthru
      _
    %v23 = vld [vmem:[#allocation2] sm:$0xff]
    %v24 = vld [vmem:[#allocation2 + $0x8] sm:$0xff]
    %v25 = vrsqrt.pop %v23
    %v26 = vmul.f32 %v23, %v25
    %vm27 = vcmp.eq.f32.partialorder %v23, inf
    %v28 = vsel %vm27, %v23, %v26
    %vm29 = vcmp.eq.f32.partialorder %v23, 0.0
    %v30 = vand.u32 %v23, 2147483648
    %v31 = vsel %vm29, %v30, %v28
    %v32 = vrsqrt.pop %v24
    %v33 = vmul.f32 %v24, %v32
    %vm34 = vcmp.eq.f32.partialorder %v24, inf
    %v35 = vsel %vm34, %v24, %v33
    %vm36 = vcmp.eq.f32.partialorder %v24, 0.0
    %v37 = vand.u32 %v24, 2147483648
    %v38 = vsel %vm36, %v37, %v35
    %v39 = vmul.f32 %v31, %v23
    %v40 = vmul.f32 %v38, %v24
    %v41 = vmul.f32 %v39, %v23
    %v42 = vmul.f32 %v40, %v24
    %43 = vst [vmem:[#allocation5] sm:$0xff] %v41
    %44 = vst [vmem:[#allocation5 + $0x8] sm:$0xff] %v42
    // Predicated region
    $region10: #{tpu_custom_call.1} parent=1 // pred_check
      _
    $region11: #{tpu_custom_call.1} parent=1 // pred_check_branch
      %46 = sbr.rel (0) target = $region13
    $region12: #{tpu_custom_call.1} parent=1 // pred_region
      %s48 = ssub.s32 256, 256
      %49 = vsyncadd [#allocation4], %s48
      %s50 = sshll.u32 [#allocation5], 4
      %s51 = int_to_ptr.vmem [resolvable:$true] %s50
      %56 = dma.vmem_to_hbm [thread:$0]  %s51, 256, %s1, [#allocation4], 128, 128, 8
    $region13: #{tpu_custom_call.1} parent=1 // pred_fallthru
      _
    // Predicated region
    $region14: #{tpu_custom_call.1} parent=1 // pred_check
      _
    $region15: #{tpu_custom_call.1} parent=1 // pred_check_branch
      %58 = sbr.rel (0) target = $region17
    $region16: #{tpu_custom_call.1} parent=1 // pred_region
      %59 = dma.done [#allocation4], 256
    $region17: #{tpu_custom_call.1} parent=1 // pred_fallthru
      _
    %60 = vsyncpa [#allocation3], 1
    %61 = vsyncpa [#allocation4], 1

</llo_original>
